<compile_context>
chip_gen: v6e
topology: v6e:2x2x1
jax: 0.10.0
libtpu: 0.0.40
codegen_flags: <defaults>
</compile_context>

<pallas_src>
import jax
import jax.numpy as jnp
from jax.experimental import pallas as pl
from jax.experimental.pallas import tpu as pltpu

_COLS = 512           # lane-dense slab width (multiple of 128)
_ROW_TILE_MAX = 512   # rows per grid step; ~6 MiB double-buffered f32 (safe on v5e/v6e/v7x)


def _round_up(v, m):
    return -(-v // m) * m


def _pick_row_tile(rows):
    """Pick (row_tile, padded_rows) for a row count that is a multiple of 16.

    Chooses the largest tile (multiple of 16, <= _ROW_TILE_MAX) such that
      * round-up padding waste stays <= rows // 8 (~12%), and
      * the grid has >= 2 steps whenever rows >= 32 (keeps both v7x TCs busy).
    """
    for cand in (512, 384, 256, 192, 128, 96, 64, 48, 32, 16):
        if cand > _ROW_TILE_MAX or cand > rows:
            continue
        padded = _round_up(rows, cand)
        if rows >= 32 and padded // cand < 2:
            continue                      # would leave one v7x TensorCore idle
        if padded - rows <= rows // 8:
            return cand, padded
    return 16, _round_up(rows, 16)


def _logreg_kernel(params_ref, x_ref, o_ref):
    # params_ref: SMEM (3,) f32 = [w0, w1, b]
    # x_ref:      VMEM (2, row_tile, _COLS)  -- fused feature-major slab
    # o_ref:      VMEM (row_tile, _COLS)
    w0 = params_ref[0]
    w1 = params_ref[1]
    b = params_ref[2]
    x0 = x_ref[0].astype(jnp.float32)
    x1 = x_ref[1].astype(jnp.float32)
    z = x0 * w0 + x1 * w1 + b                             # VPU mul-add (no MXU)
    o_ref[...] = jax.nn.sigmoid(z).astype(o_ref.dtype)    # EUP transcendental


def logistic_regression_forward(x, weight, bias, *, use_pallas=None):
    """sigmoid(x @ weight.T + bias).  x: [N, 2]; weight: [1, 2]; bias: [1] -> [N, 1]."""
    n, f = x.shape
    assert f == 2, "LogisticRegression expects 2 input features"
    if x.dtype not in (jnp.float32, jnp.bfloat16):
        x = x.astype(jnp.float32)
    io_dtype = x.dtype

    if use_pallas is None:
        use_pallas = n >= _COLS   # below one lane row the launch/layout overhead dominates
    if not use_pallas:
        z = x.astype(jnp.float32) @ weight.reshape(2, 1).astype(jnp.float32)
        z = z + bias.reshape(1, 1).astype(jnp.float32)
        return jax.nn.sigmoid(z).astype(io_dtype)

    # Scalar parameters -> one tiny SMEM array [w0, w1, b].
    params = jnp.concatenate(
        [weight.reshape(-1), bias.reshape(-1)]).astype(jnp.float32)   # (3,)

    # Sample s lives at slab position (s // _COLS, s % _COLS).
    rows = _round_up(max(-(-n // _COLS), 1), 16)   # multiple of 16 (bf16-safe sublanes)
    row_tile, rows = _pick_row_tile(rows)
    n_slab = rows * _COLS

    # One fused wrapper pass (pad only when needed) -> feature-major slab.
    xp = x if n_slab == n else jnp.pad(x, ((0, n_slab - n), (0, 0)))
    slab = xp.T.reshape(2, rows, _COLS)

    out = pl.pallas_call(
        _logreg_kernel,
        out_shape=jax.ShapeDtypeStruct((rows, _COLS), io_dtype),
        grid=(rows // row_tile,),
        in_specs=[
            pl.BlockSpec(memory_space=pltpu.MemorySpace.SMEM),        # [w0, w1, b]
            pl.BlockSpec((2, row_tile, _COLS), lambda i: (0, i, 0)),  # fused x slab
        ],
        out_specs=pl.BlockSpec((row_tile, _COLS), lambda i: (i, 0)),
        compiler_params=pltpu.CompilerParams(
            dimension_semantics=("parallel",)),
    )(params, slab)

    flat = out.reshape(-1)            # free (contiguous)
    if n_slab != n:
        flat = flat[:n]               # only pays a copy when padding existed
    return flat.reshape(n, 1)


if __name__ == "__main__":
    key = jax.random.PRNGKey(0)
    kx, kw, kb = jax.random.split(key, 3)

    F = 2  # LogisticRegression: Linear(2, 1)
    bound = 1.0 / jnp.sqrt(jnp.array(F, jnp.float32))
    weight = jax.random.uniform(kw, (1, F), jnp.float32, -bound, bound)   # [out, in]
    bias = jax.random.uniform(kb, (1,), jnp.float32, -bound, bound)

    def ref(xv):
        return jax.nn.sigmoid(xv @ weight.T + bias)

    # 1) Tiny batch -> plain-XLA fast path.
    x_small = jax.random.normal(kx, (8, F), dtype=jnp.float32)
    out_small = jax.block_until_ready(logistic_regression_forward(x_small, weight, bias))
    assert out_small.shape == (8, 1)
    assert jnp.allclose(out_small, ref(x_small), atol=1e-5)

    # 2) Same tiny batch forced through the Pallas kernel (exercises padding + slice).
    out_small_pl = jax.block_until_ready(
        logistic_regression_forward(x_small, weight, bias, use_pallas=True))
    assert out_small_pl.shape == (8, 1)
    assert jnp.allclose(out_small_pl, ref(x_small), atol=1e-5)

    # 3) Ragged mid-size batch through the Pallas path (padding, single-step grid).
    x_mid = jax.random.normal(kx, (5000, F), dtype=jnp.float32)
    out_mid = jax.block_until_ready(logistic_regression_forward(x_mid, weight, bias))
    assert out_mid.shape == (5000, 1)
    assert jnp.allclose(out_mid, ref(x_mid), atol=1e-5)

    # 4) Slab-aligned batch: no padding, no output-slice copy, multi-step parallel grid.
    n_big = 64 * _COLS
    x_big = jax.random.normal(kx, (n_big, F), dtype=jnp.float32)
    out_big = jax.block_until_ready(logistic_regression_forward(x_big, weight, bias))
    assert out_big.shape == (n_big, 1)
    assert jnp.allclose(out_big, ref(x_big), atol=1e-5)

    print("KERNEL_OK")
</pallas_src>

<mosaic_0001>
module attributes {stable_mosaic.version = 11 : i64} {
  func.func @_logreg_kernel(%arg0: i32, %arg1: memref<3xf32, #tpu.memory_space<smem>>, %arg2: memref<2x16x512xf32, #tpu.memory_space<vmem>>, %arg3: memref<16x512xf32, #tpu.memory_space<vmem>>) attributes {dimension_semantics = [#tpu.dimension_semantics<parallel>], iteration_bounds = array<i64: 1>, scalar_prefetch = 0 : i64, scratch_operands = 0 : i64, tpu.core_type = #tpu.core_type<tc>, window_params = [{transform_indices = @transform_0, window_bounds = array<i64: 3>}, {transform_indices = @transform_1, window_bounds = array<i64: 2, 16, 512>}, {transform_indices = @transform_2, window_bounds = array<i64: 16, 512>}]} {
    %c0 = arith.constant 0 : index
    %0 = memref.load %arg1[%c0] : memref<3xf32, #tpu.memory_space<smem>>
    %c1 = arith.constant 1 : index
    %1 = memref.load %arg1[%c1] : memref<3xf32, #tpu.memory_space<smem>>
    %c2 = arith.constant 2 : index
    %2 = memref.load %arg1[%c2] : memref<3xf32, #tpu.memory_space<smem>>
    %c0_0 = arith.constant 0 : index
    %c0_1 = arith.constant 0 : index
    %c0_2 = arith.constant 0 : index
    %3 = vector.load %arg2[%c0_0, %c0_1, %c0_2] : memref<2x16x512xf32, #tpu.memory_space<vmem>>, vector<1x16x512xf32>
    %4 = vector.shape_cast %3 : vector<1x16x512xf32> to vector<16x512xf32>
    %c1_3 = arith.constant 1 : index
    %c0_4 = arith.constant 0 : index
    %c0_5 = arith.constant 0 : index
    %5 = vector.load %arg2[%c1_3, %c0_4, %c0_5] : memref<2x16x512xf32, #tpu.memory_space<vmem>>, vector<1x16x512xf32>
    %6 = vector.shape_cast %5 : vector<1x16x512xf32> to vector<16x512xf32>
    %7 = vector.broadcast %0 : f32 to vector<16x512xf32>
    %8 = arith.mulf %4, %7 : vector<16x512xf32>
    %9 = vector.broadcast %1 : f32 to vector<16x512xf32>
    %10 = arith.mulf %6, %9 : vector<16x512xf32>
    %11 = arith.addf %8, %10 : vector<16x512xf32>
    %12 = vector.broadcast %2 : f32 to vector<16x512xf32>
    %13 = arith.addf %11, %12 : vector<16x512xf32>
    %14 = arith.negf %13 : vector<16x512xf32>
    %15 = math.exp %14 : vector<16x512xf32>
    %cst = arith.constant 1.000000e+00 : f32
    %16 = vector.broadcast %cst : f32 to vector<16x512xf32>
    %17 = arith.addf %16, %15 : vector<16x512xf32>
    %18 = arith.divf %16, %17 : vector<16x512xf32>
    %c0_6 = arith.constant 0 : index
    %c0_7 = arith.constant 0 : index
    %19 = vector.load %arg3[%c0_6, %c0_7] : memref<16x512xf32, #tpu.memory_space<vmem>>, vector<16x512xf32>
    tpu.vector_store %arg3[%c0_6, %c0_7], %18 {strides = array<i32>} : memref<16x512xf32, #tpu.memory_space<vmem>>, vector<16x512xf32>,
    return
  }
  func.func @transform_0(%arg0: i32) -> i32 {
    %c0_i32 = arith.constant 0 : i32
    %c0_i32_0 = arith.constant 0 : i32
    return %c0_i32 : i32
  }
  func.func @transform_1(%arg0: i32) -> (i32, i32, i32) {
    %c0_i32 = arith.constant 0 : i32
    %c0_i32_0 = arith.constant 0 : i32
    %c0_i32_1 = arith.constant 0 : i32
    return %c0_i32, %arg0, %c0_i32_0 : i32, i32, i32
  }
  func.func @transform_2(%arg0: i32) -> (i32, i32) {
    %c0_i32 = arith.constant 0 : i32
    %c0_i32_0 = arith.constant 0 : i32
    return %arg0, %c0_i32 : i32, i32
  }
}

</mosaic_0001>

<llo_original>
// kernel: tpu_custom_call.1
$region0: #{tpu_custom_call.1}
  #allocation0 [shape = 'u32[]', space=smem, size = 0x4, offset = 0x4, fixed_abs, tag = 'smem constant byte address 0x4 - core index']
  #allocation1 [shape = 'u32[144,128]{1,0:T(1,128)}', space=vmem, size = 0x12000, scoped, tag = 'internal scratch']
  %s0 = inlined_call_operand.hbm [shape: f32[3], index: 0, kind: input, shape index: {}]
  %s1 = inlined_call_operand.hbm [shape: f32[2,16,512], index: 1, kind: input, shape index: {}]
  %s2 = inlined_call_operand.hbm [shape: f32[16,512], index: 2, kind: output, shape index: {}]
  %s3 = sld [smem:[#allocation0]]
  $region26: #{tpu_custom_call.1} parent=0
    _
  %s5 = ssub.s32 1, %s3
  %s6 = scalar_select 0, %s5, %s3
  $region1: #{tpu_custom_call.1} parent=0
    #allocation2 [shape = 'u8[512]{0}', space=smem, size = 0x200, scoped, tag = 'input window, operand 0, single buffered']
    #allocation3 [shape = 's32[1]{0}', space=sflag, size = 0x4, scoped, tag = 'scoped memory for tpu_custom_call.1']
    #allocation4 [shape = 's32[1]{0}', space=sflag, size = 0x4, scoped, tag = 'scoped memory for tpu_custom_call.1']
    #allocation5 [shape = 's32[1]{0}', space=sflag, size = 0x4, scoped, tag = 'scoped memory for tpu_custom_call.1']
    #allocation6 [shape = 'u8[65536]{0}', space=vmem, size = 0x10000, scoped, tag = 'input window, operand 1, single buffered']
    #allocation7 [shape = 'u8[32768]{0}', space=vmem, size = 0x8000, scoped, tag = 'output window, operand 0, single buffered']
    %7 = vsyncpa [#allocation5], 0
    %8 = vsyncpa [#allocation3], 0
    %9 = vsyncpa [#allocation4], 0
    // Predicated region
    $region2: #{tpu_custom_call.1} parent=1 // pred_check
      _
    $region3: #{tpu_custom_call.1} parent=1 // pred_check_branch
      %11 = sbr.rel (0) target = $region5
    $region4: #{tpu_custom_call.1} parent=1 // pred_region
      %s13 = ssub.s32 16, 16
      %14 = vsyncadd [#allocation5], %s13
      %17 = dma.hbm_to_smem %s0, 16, [#allocation2], [#allocation5]
    $region5: #{tpu_custom_call.1} parent=1 // pred_fallthru
      _
    // Predicated region
    $region6: #{tpu_custom_call.1} parent=1 // pred_check
      _
    $region7: #{tpu_custom_call.1} parent=1 // pred_check_branch
      %19 = sbr.rel (0) target = $region9
    $region8: #{tpu_custom_call.1} parent=1 // pred_region
      %s21 = ssub.s32 2048, 2048
      %22 = vsyncadd [#allocation3], %s21
      %s23 = sshll.u32 [#allocation6], 4
      %s24 = int_to_ptr.vmem [resolvable:$true] %s23
      %29 = dma.hbm_to_vmem [thread:$0]  %s1, 2048, %s24, [#allocation3], 512, 512, 32
    $region9: #{tpu_custom_call.1} parent=1 // pred_fallthru
      _
    // Predicated region
    $region10: #{tpu_custom_call.1} parent=1 // pred_check
      _
    $region11: #{tpu_custom_call.1} parent=1 // pred_check_branch
      %31 = sbr.rel (0) target = $region13
    $region12: #{tpu_custom_call.1} parent=1 // pred_region
      %32 = dma.done [#allocation5], 16
    $region13: #{tpu_custom_call.1} parent=1 // pred_fallthru
      _
    // Predicated region
    $region14: #{tpu_custom_call.1} parent=1 // pred_check
      _
    $region15: #{tpu_custom_call.1} parent=1 // pred_check_branch
      %34 = sbr.rel (0) target = $region17
    $region16: #{tpu_custom_call.1} parent=1 // pred_region
      %35 = dma.done [#allocation3], 2048
    $region17: #{tpu_custom_call.1} parent=1 // pred_fallthru
      _
    %36 = sfence
    %s37 = sld [smem:[#allocation2]]
    %s38 = sld [smem:[#allocation2 + $0x1]]
    %s39 = sld [smem:[#allocation2 + $0x2]]
    %v40 = vld [vmem:[#allocation6] sm:$0xff]
    %v41 = vld [vmem:[#allocation6 + $0x8] sm:$0xff]
    %v42 = vld [vmem:[#allocation6 + $0x10] sm:$0xff]
    %v43 = vld [vmem:[#allocation6 + $0x18] sm:$0xff]
    %v44 = vld [vmem:[#allocation6 + $0x20] sm:$0xff]
    %v45 = vld [vmem:[#allocation6 + $0x28] sm:$0xff]
    %v46 = vld [vmem:[#allocation6 + $0x30] sm:$0xff]
    %v47 = vld [vmem:[#allocation6 + $0x38] sm:$0xff]
    %s48 = scalar_lea.vmem [#allocation6], 64
    %v49 = vld [vmem:[%s48] sm:$0xff]
    %v50 = vld [vmem:[%s48 + $0x8] sm:$0xff]
    %v51 = vld [vmem:[%s48 + $0x10] sm:$0xff]
    %v52 = vld [vmem:[%s48 + $0x18] sm:$0xff]
    %v53 = vld [vmem:[%s48 + $0x20] sm:$0xff]
    %v54 = vld [vmem:[%s48 + $0x28] sm:$0xff]
    %v55 = vld [vmem:[%s48 + $0x30] sm:$0xff]
    %v56 = vld [vmem:[%s48 + $0x38] sm:$0xff]
    %v57 = vstv %s37
    %v58 = vmul.f32 %v40, %v57
    %v59 = vmul.f32 %v41, %v57
    %v60 = vmul.f32 %v42, %v57
    %v61 = vmul.f32 %v43, %v57
    %v62 = vmul.f32 %v44, %v57
    %v63 = vmul.f32 %v45, %v57
    %v64 = vmul.f32 %v46, %v57
    %v65 = vmul.f32 %v47, %v57
    %v66 = vstv %s38
    %v67 = vmul.f32 %v49, %v66
    %v68 = vmul.f32 %v50, %v66
    %v69 = vmul.f32 %v51, %v66
    %v70 = vmul.f32 %v52, %v66
    %v71 = vmul.f32 %v53, %v66
    %v72 = vmul.f32 %v54, %v66
    %v73 = vmul.f32 %v55, %v66
    %v74 = vmul.f32 %v56, %v66
    %v75 = vadd.f32 %v58, %v67
    %v76 = vadd.f32 %v59, %v68
    %v77 = vadd.f32 %v60, %v69
    %v78 = vadd.f32 %v61, %v70
    %v79 = vadd.f32 %v62, %v71
    %v80 = vadd.f32 %v63, %v72
    %v81 = vadd.f32 %v64, %v73
    %v82 = vadd.f32 %v65, %v74
    %v83 = vstv %s39
    %v84 = vadd.f32 %v75, %v83
    %v85 = vadd.f32 %v76, %v83
    %v86 = vadd.f32 %v77, %v83
    %v87 = vadd.f32 %v78, %v83
    %v88 = vadd.f32 %v79, %v83
    %v89 = vadd.f32 %v80, %v83
    %v90 = vadd.f32 %v81, %v83
    %v91 = vadd.f32 %v82, %v83
    %v92 = vxor.u32 %v84, 2147483648
    %v93 = vxor.u32 %v85, 2147483648
    %v94 = vxor.u32 %v86, 2147483648
    %v95 = vxor.u32 %v87, 2147483648
    %v96 = vxor.u32 %v88, 2147483648
    %v97 = vxor.u32 %v89, 2147483648
    %v98 = vxor.u32 %v90, 2147483648
    %v99 = vxor.u32 %v91, 2147483648
    %v100 = vmul.f32 %v92, 1.442695
    %v101 = vpow.pop %v100
    %v102 = vmul.f32 %v93, 1.442695
    %v103 = vpow.pop %v102
    %v104 = vmul.f32 %v94, 1.442695
    %v105 = vpow.pop %v104
    %v106 = vmul.f32 %v95, 1.442695
    %v107 = vpow.pop %v106
    %v108 = vmul.f32 %v96, 1.442695
    %v109 = vpow.pop %v108
    %v110 = vmul.f32 %v97, 1.442695
    %v111 = vpow.pop %v110
    %v112 = vmul.f32 %v98, 1.442695
    %v113 = vpow.pop %v112
    %v114 = vmul.f32 %v99, 1.442695
    %v115 = vpow.pop %v114
    %v116 = vadd.f32 %v101, 1.0
    %v117 = vadd.f32 %v103, 1.0
    %v118 = vadd.f32 %v105, 1.0
    %v119 = vadd.f32 %v107, 1.0
    %v120 = vadd.f32 %v109, 1.0
    %v121 = vadd.f32 %v111, 1.0
    %v122 = vadd.f32 %v113, 1.0
    %v123 = vadd.f32 %v115, 1.0
    %v124 = vrcp.pop %v116
    %v125 = vmul.f32 1.0, %v124
    %v126 = vrcp.pop %v117
    %v127 = vmul.f32 1.0, %v126
    %v128 = vrcp.pop %v118
    %v129 = vmul.f32 1.0, %v128
    %v130 = vrcp.pop %v119
    %v131 = vmul.f32 1.0, %v130
    %v132 = vrcp.pop %v120
    %v133 = vmul.f32 1.0, %v132
    %v134 = vrcp.pop %v121
    %v135 = vmul.f32 1.0, %v134
    %v136 = vrcp.pop %v122
    %v137 = vmul.f32 1.0, %v136
    %v138 = vrcp.pop %v123
    %v139 = vmul.f32 1.0, %v138
    %140 = vst [vmem:[#allocation7] sm:$0xff] %v125
    %141 = vst [vmem:[#allocation7 + $0x8] sm:$0xff] %v127
    %142 = vst [vmem:[#allocation7 + $0x10] sm:$0xff] %v129
    %143 = vst [vmem:[#allocation7 + $0x18] sm:$0xff] %v131
    %144 = vst [vmem:[#allocation7 + $0x20] sm:$0xff] %v133
    %145 = vst [vmem:[#allocation7 + $0x28] sm:$0xff] %v135
    %146 = vst [vmem:[#allocation7 + $0x30] sm:$0xff] %v137
    %147 = vst [vmem:[#allocation7 + $0x38] sm:$0xff] %v139
    // Predicated region
    $region18: #{tpu_custom_call.1} parent=1 // pred_check
      _
    $region19: #{tpu_custom_call.1} parent=1 // pred_check_branch
      %149 = sbr.rel (0) target = $region21
    $region20: #{tpu_custom_call.1} parent=1 // pred_region
      %s151 = ssub.s32 1024, 1024
      %152 = vsyncadd [#allocation4], %s151
      %s153 = sshll.u32 [#allocation7], 4
      %s154 = int_to_ptr.vmem [resolvable:$true] %s153
      %159 = dma.vmem_to_hbm [thread:$0]  %s154, 1024, %s2, [#allocation4], 512, 512, 32
    $region21: #{tpu_custom_call.1} parent=1 // pred_fallthru
      _
    // Predicated region
    $region22: #{tpu_custom_call.1} parent=1 // pred_check
      _
    $region23: #{tpu_custom_call.1} parent=1 // pred_check_branch
      %161 = sbr.rel (0) target = $region25
    $region24: #{tpu_custom_call.1} parent=1 // pred_region
      %162 = dma.done [#allocation4], 1024
    $region25: #{tpu_custom_call.1} parent=1 // pred_fallthru
      _
    %163 = vsyncpa [#allocation3], 1
    %164 = vsyncpa [#allocation4], 1
    %165 = vsyncpa [#allocation5], 1

</llo_original>
